<compile_context>
chip_gen: v6e
topology: v6e:2x2x1
jax: 0.10.0
libtpu: 0.0.40
codegen_flags: <defaults>
</compile_context>

<pallas_src>
import functools

import jax
import jax.numpy as jnp
from jax.experimental import pallas as pl
from jax.experimental.pallas import tpu as pltpu


def _cdiv(a, b):
    return (a + b - 1) // b


def _round_up(a, b):
    return _cdiv(a, b) * b


def _tpu_vmem_and_cores():
    """Best-effort query of per-core VMEM capacity and TensorCores per device."""
    vmem_cap = None
    num_tc = 1
    try:
        info = pltpu.get_tpu_info()
        cap = getattr(info, "vmem_capacity_bytes", None)
        if cap:
            vmem_cap = int(cap)
    except Exception:
        pass
    try:
        kind = jax.devices()[0].device_kind.lower()
        # Dual-TensorCore / megacore chips (M axis sharded via "parallel").
        if any(t in kind for t in ("v4", "v5p", "v7")):
            num_tc = 2
        if vmem_cap is None:
            if any(t in kind for t in ("v5e", "v5 lite", "v5lite", "v6")):
                vmem_cap = 128 << 20
            else:
                vmem_cap = 64 << 20          # conservative (v7x per-TC VMEM)
    except Exception:
        pass
    if vmem_cap is None:
        vmem_cap = 64 << 20
    return vmem_cap, num_tc


def _hidden_tile_candidates(H, cap=1024):
    """Divisors of H, multiples of 256 (MXU width) preferred, descending."""
    cands = [t for t in range(256, min(H, cap) + 1, 256) if H % t == 0]
    if not cands:
        cands = [t for t in range(128, min(H, cap) + 1, 128) if H % t == 0]
    if not cands:
        cands = [H]
    return sorted(cands, reverse=True)


def _vmem_footprint(tm, th, D, in_itemsize, out_itemsize, acc_in_output):
    """Approximate per-step VMEM bytes (double-buffered tiles + intermediates)."""
    acc = 0 if acc_in_output else tm * D * 4
    return (2 * tm * D * in_itemsize           # x block
            + 2 * 2 * D * th * in_itemsize     # w1 gate + up tiles
            + 2 * th * D * in_itemsize         # w2 row tile
            + 2 * tm * D * out_itemsize        # output block
            + acc                              # f32 scratch accumulator (if any)
            + 4 * tm * th * 4                  # a / z / s / g f32 intermediates
            + tm * D * 4)                      # fc2 partial product before accumulate


def _glu_kernel_acc_out(x_ref, wg_ref, wu_ref, w2_ref, o_ref, *, approx):
    """f32 output: accumulate directly into the resident output block."""
    h = pl.program_id(1)

    @pl.when(h == 0)
    def _():
        o_ref[...] = jnp.zeros_like(o_ref)

    x = x_ref[...]
    a = jnp.dot(x, wg_ref[...], preferred_element_type=jnp.float32)   # (TM, TH)
    z = jnp.dot(x, wu_ref[...], preferred_element_type=jnp.float32)   # (TM, TH)
    s = pl.reciprocal(1.0 + jnp.exp(-a), approx=approx)                # EUP slot
    g = a * s * z                                                      # silu(a) * z, f32
    o_ref[...] += jnp.dot(g.astype(w2_ref.dtype), w2_ref[...],
                          preferred_element_type=jnp.float32)          # (TM, D)


def _glu_kernel_scratch(x_ref, wg_ref, wu_ref, w2_ref, o_ref, acc_ref, *, approx):
    """Non-f32 output: f32 VMEM scratch accumulator, cast on the last H step."""
    h = pl.program_id(1)

    @pl.when(h == 0)
    def _():
        acc_ref[...] = jnp.zeros_like(acc_ref)

    x = x_ref[...]
    a = jnp.dot(x, wg_ref[...], preferred_element_type=jnp.float32)
    z = jnp.dot(x, wu_ref[...], preferred_element_type=jnp.float32)
    s = pl.reciprocal(1.0 + jnp.exp(-a), approx=approx)
    g = a * s * z
    acc_ref[...] += jnp.dot(g.astype(w2_ref.dtype), w2_ref[...],
                            preferred_element_type=jnp.float32)

    @pl.when(h == pl.num_programs(1) - 1)
    def _():
        o_ref[...] = acc_ref[...].astype(o_ref.dtype)


def glu_forward(x, w1, w2, hidden_dim, *, tm=None, th=None,
                compute_dtype=jnp.bfloat16, approx_reciprocal=False):
    """Fused GLU forward.

    x:  (B, S, D)
    w1: (D, 2*H)   (== PyTorch fc1.weight.T)
    w2: (H, D)     (== PyTorch fc2.weight.T)
    compute_dtype: matmul input dtype (default bf16; f32 accumulation either way).
                   Output keeps x.dtype.  In a real model, store weights in
                   compute_dtype so the casts below are free.
    approx_reciprocal: use EUP approx reciprocal in the sigmoid (looser tolerance).
    """
    B, S, D = x.shape
    H = hidden_dim
    assert w1.shape == (D, 2 * H)
    assert w2.shape == (H, D)
    assert H % 128 == 0, "hidden_dim must be a multiple of 128"

    out_dtype = x.dtype
    if compute_dtype is not None and jnp.dtype(compute_dtype) != jnp.dtype(x.dtype):
        x = x.astype(compute_dtype)
        w1 = w1.astype(compute_dtype)
        w2 = w2.astype(compute_dtype)

    in_dtype = x.dtype
    isz = jnp.dtype(in_dtype).itemsize
    osz = jnp.dtype(out_dtype).itemsize
    acc_in_output = jnp.dtype(out_dtype) == jnp.dtype(jnp.float32)

    M = B * S
    x2d = x.reshape(M, D)

    # ---- generation-aware VMEM budget -------------------------------------
    vmem_cap, num_tc = _tpu_vmem_and_cores()
    if vmem_cap <= (64 << 20):
        vmem_budget = vmem_cap - (8 << 20)                      # v7x: ~56 MiB
    else:
        vmem_budget = min(vmem_cap - (28 << 20), 100 << 20)     # v5e/v6e: ~100 MiB
    vmem_budget = max(vmem_budget, 8 << 20)

    # Sub-32-bit dtypes pack rows along sublanes: f32 -> 8, bf16 -> 16, int8 -> 32.
    min_rows = 8 * max(1, 4 // isz)

    # ---- row tile (tm): target 512 to amortize n_m-fold weight re-streaming ----
    if tm is None:
        tm_cap = min(512, _round_up(M, min_rows))
        tm_cands = []
        t = 512
        while t >= min_rows:
            if t <= tm_cap:
                tm_cands.append(t)
            t //= 2
        if tm_cap not in tm_cands:
            tm_cands.insert(0, tm_cap)
        # Dual-TC chips: prefer >= num_tc row blocks so the "parallel" M axis
        # keeps both TensorCores busy.  Single-TC chips skip this shrink.
        # (Even n_m is preferable for perfect balance when M permits.)
        if num_tc > 1:
            par = [t for t in tm_cands if _cdiv(M, t) >= num_tc]
            if par:
                tm_cands = par
    else:
        tm_cands = [tm]

    # ---- hidden tile (th): >= 256 for MXU width / DMA run length --------------
    if th is None:
        th_cands = _hidden_tile_candidates(H, cap=1024)
    else:
        assert H % th == 0 and th % 128 == 0
        th_cands = [th]

    chosen = None
    for tmc in tm_cands:            # larger tm first: less weight HBM re-streaming
        for thc in th_cands:        # then larger th: fewer accumulator passes
            if _vmem_footprint(tmc, thc, D, isz, osz, acc_in_output) <= vmem_budget:
                chosen = (tmc, thc)
                break
        if chosen is not None:
            break
    if chosen is None:
        chosen = (tm_cands[-1], th_cands[-1])   # smallest candidates
    tm, th = chosen

    M_pad = _round_up(M, tm)
    if M_pad != M:
        x2d = jnp.pad(x2d, ((0, M_pad - M), (0, 0)))   # zero rows -> exact zeros out
    n_m = M_pad // tm
    n_h = H // th

    # Advisory cost for XLA's scheduler (weights are re-streamed n_m times).
    cost = pl.CostEstimate(
        flops=6 * M_pad * D * H,                   # 2*M*D*2H (fc1) + 2*M*H*D (fc2)
        transcendentals=M_pad * H,                 # exp in silu
        bytes_accessed=isz * (M_pad * D + n_m * 3 * D * H) + osz * M_pad * D,
    )

    footprint = _vmem_footprint(tm, th, D, isz, osz, acc_in_output)
    vmem_limit = int(min(vmem_budget, max(footprint + (4 << 20), 16 << 20)))

    in_specs = [
        pl.BlockSpec((tm, D), lambda i, h: (i, 0)),         # x rows (resident over h)
        pl.BlockSpec((D, th), lambda i, h: (0, h)),         # w1 gate tile
        pl.BlockSpec((D, th), lambda i, h: (0, h + n_h)),   # w1 up tile (col offset H)
        pl.BlockSpec((th, D), lambda i, h: (h, 0)),         # w2 row tile
    ]
    out_spec = pl.BlockSpec((tm, D), lambda i, h: (i, 0))

    if acc_in_output:
        kernel = functools.partial(_glu_kernel_acc_out, approx=approx_reciprocal)
        scratch = ()
    else:
        kernel = functools.partial(_glu_kernel_scratch, approx=approx_reciprocal)
        scratch = (pltpu.VMEM((tm, D), jnp.float32),)

    out2d = pl.pallas_call(
        kernel,
        out_shape=jax.ShapeDtypeStruct((M_pad, D), out_dtype),
        grid_spec=pltpu.PrefetchScalarGridSpec(
            num_scalar_prefetch=0,
            grid=(n_m, n_h),                       # reduction (H) axis last
            in_specs=in_specs,
            out_specs=out_spec,
            scratch_shapes=scratch,
        ),
        compiler_params=pltpu.CompilerParams(
            dimension_semantics=("parallel", "arbitrary"),
            vmem_limit_bytes=vmem_limit,
        ),
        cost_estimate=cost,
    )(x2d, w1, w1, w2)   # w1 passed twice (same HBM buffer) for gate/up tiles

    if M_pad != M:
        out2d = out2d[:M]
    return out2d.reshape(B, S, D)


def glu_reference(x, w1, w2, hidden_dim, compute_dtype=None):
    """Plain-JAX reference matching the PyTorch forward (optionally in compute_dtype)."""
    if compute_dtype is not None:
        xc, w1c, w2c = (t.astype(compute_dtype) for t in (x, w1, w2))
    else:
        xc, w1c, w2c = x, w1, w2
    h = jnp.einsum("bsd,dk->bsk", xc, w1c, preferred_element_type=jnp.float32)
    a = h[..., :hidden_dim]
    z = h[..., hidden_dim:]
    g = jax.nn.silu(a) * z
    if compute_dtype is not None:
        g = g.astype(compute_dtype)
    out = jnp.einsum("bsh,hd->bsd", g, w2c, preferred_element_type=jnp.float32)
    return out.astype(x.dtype)


if __name__ == "__main__":
    # Module config: GLU(dim=128, hidden_dim=100, multiple_of=256)
    #   -> hidden_dim rounds up to 256
    dim = 128
    requested_hidden = 100
    multiple_of = 256
    hidden_dim = multiple_of * ((requested_hidden + multiple_of - 1) // multiple_of)

    B, S = 2, 8

    key = jax.random.PRNGKey(0)
    kx, k1, k2 = jax.random.split(key, 3)

    x = jax.random.normal(kx, (B, S, dim), dtype=jnp.float32)
    # Deterministic synthetic params (pre-transposed vs. PyTorch Linear layout).
    w1 = jax.random.normal(k1, (dim, 2 * hidden_dim), dtype=jnp.float32) * 0.02
    w2 = jax.random.normal(k2, (hidden_dim, dim), dtype=jnp.float32) * 0.02

    # Default path: bf16 MXU compute, f32 accumulation, f32 output.
    out = glu_forward(x, w1, w2, hidden_dim)
    out = jax.block_until_ready(out)
    assert out.shape == (B, S, dim)

    ref_matched = glu_reference(x, w1, w2, hidden_dim, compute_dtype=jnp.bfloat16)
    ref_f32 = glu_reference(x, w1, w2, hidden_dim)

    assert jnp.allclose(out, ref_matched, atol=2e-3, rtol=2e-3), \
        "mismatch vs bf16-matched reference"
    assert jnp.allclose(out, ref_f32, atol=5e-3, rtol=5e-2), \
        "mismatch vs f32 reference"

    print("KERNEL_OK")
</pallas_src>

<mosaic_0001>
module attributes {stable_mosaic.version = 11 : i64} {
  func.func @_glu_kernel_acc_out(%arg0: i32, %arg1: i32, %arg2: memref<16x128xbf16, #tpu.memory_space<vmem>>, %arg3: memref<128x256xbf16, #tpu.memory_space<vmem>>, %arg4: memref<128x256xbf16, #tpu.memory_space<vmem>>, %arg5: memref<256x128xbf16, #tpu.memory_space<vmem>>, %arg6: memref<16x128xf32, #tpu.memory_space<vmem>>) attributes {dimension_semantics = [#tpu.dimension_semantics<parallel>, #tpu.dimension_semantics<arbitrary>], iteration_bounds = array<i64: 1, 1>, scalar_prefetch = 0 : i64, scratch_operands = 0 : i64, tpu.core_type = #tpu.core_type<tc>, window_params = [{transform_indices = @transform_0, window_bounds = array<i64: 16, 128>}, {transform_indices = @transform_1, window_bounds = array<i64: 128, 256>}, {transform_indices = @transform_2, window_bounds = array<i64: 128, 256>}, {transform_indices = @transform_3, window_bounds = array<i64: 256, 128>}, {transform_indices = @transform_4, window_bounds = array<i64: 16, 128>}]} {
    %c0_i32 = arith.constant 0 : i32
    %0 = arith.cmpi eq, %arg1, %c0_i32 : i32
    %1 = arith.extui %0 : i1 to i32
    %c0_i32_0 = arith.constant 0 : i32
    %2 = arith.cmpi ne, %1, %c0_i32_0 : i32
    scf.if %2 {
      %cst_16 = arith.constant 0.000000e+00 : f32
      %22 = vector.broadcast %cst_16 : f32 to vector<16x128xf32>
      %c0_17 = arith.constant 0 : index
      %c0_18 = arith.constant 0 : index
      %23 = vector.load %arg6[%c0_17, %c0_18] : memref<16x128xf32, #tpu.memory_space<vmem>>, vector<16x128xf32>
      tpu.vector_store %arg6[%c0_17, %c0_18], %22 {strides = array<i32>} : memref<16x128xf32, #tpu.memory_space<vmem>>, vector<16x128xf32>,
    } else {
    }
    %c0 = arith.constant 0 : index
    %c0_1 = arith.constant 0 : index
    %3 = vector.load %arg2[%c0, %c0_1] : memref<16x128xbf16, #tpu.memory_space<vmem>>, vector<16x128xbf16>
    %c0_2 = arith.constant 0 : index
    %c0_3 = arith.constant 0 : index
    %4 = vector.load %arg3[%c0_2, %c0_3] : memref<128x256xbf16, #tpu.memory_space<vmem>>, vector<128x256xbf16>
    %cst = arith.constant dense<0.000000e+00> : vector<16x256xf32>
    %5 = tpu.matmul %3, %4, %cst {dimension_numbers = #tpu.dot_dimension_numbers<[1], [0], [0], [1], [0, 0, 1, 1], [], []>} : vector<16x128xbf16>, vector<128x256xbf16>, vector<16x256xf32> -> vector<16x256xf32>
    %c0_4 = arith.constant 0 : index
    %c0_5 = arith.constant 0 : index
    %6 = vector.load %arg4[%c0_4, %c0_5] : memref<128x256xbf16, #tpu.memory_space<vmem>>, vector<128x256xbf16>
    %cst_6 = arith.constant dense<0.000000e+00> : vector<16x256xf32>
    %7 = tpu.matmul %3, %6, %cst_6 {dimension_numbers = #tpu.dot_dimension_numbers<[1], [0], [0], [1], [0, 0, 1, 1], [], []>} : vector<16x128xbf16>, vector<128x256xbf16>, vector<16x256xf32> -> vector<16x256xf32>
    %cst_7 = arith.constant 0.000000e+00 : f32
    %8 = vector.broadcast %cst_7 : f32 to vector<16x256xf32>
    %9 = arith.subf %8, %5 : vector<16x256xf32>
    %10 = math.exp %9 : vector<16x256xf32>
    %cst_8 = arith.constant 1.000000e+00 : f32
    %11 = vector.broadcast %cst_8 : f32 to vector<16x256xf32>
    %12 = arith.addf %11, %10 : vector<16x256xf32>
    %13 = tpu.reciprocal %12 : vector<16x256xf32> -> vector<16x256xf32>
    %14 = arith.mulf %5, %13 : vector<16x256xf32>
    %15 = arith.mulf %14, %7 : vector<16x256xf32>
    %c0_9 = arith.constant 0 : index
    %c0_10 = arith.constant 0 : index
    %16 = vector.load %arg6[%c0_9, %c0_10] : memref<16x128xf32, #tpu.memory_space<vmem>>, vector<16x128xf32>
    %17 = arith.truncf %15 : vector<16x256xf32> to vector<16x256xbf16>
    %c0_11 = arith.constant 0 : index
    %c0_12 = arith.constant 0 : index
    %18 = vector.load %arg5[%c0_11, %c0_12] : memref<256x128xbf16, #tpu.memory_space<vmem>>, vector<256x128xbf16>
    %cst_13 = arith.constant dense<0.000000e+00> : vector<16x128xf32>
    %19 = tpu.matmul %17, %18, %cst_13 {dimension_numbers = #tpu.dot_dimension_numbers<[1], [0], [0], [1], [0, 0, 1, 1], [], []>} : vector<16x256xbf16>, vector<256x128xbf16>, vector<16x128xf32> -> vector<16x128xf32>
    %20 = arith.addf %16, %19 : vector<16x128xf32>
    %c0_14 = arith.constant 0 : index
    %c0_15 = arith.constant 0 : index
    %21 = vector.load %arg6[%c0_14, %c0_15] : memref<16x128xf32, #tpu.memory_space<vmem>>, vector<16x128xf32>
    tpu.vector_store %arg6[%c0_14, %c0_15], %20 {strides = array<i32>} : memref<16x128xf32, #tpu.memory_space<vmem>>, vector<16x128xf32>,
    return
  }
  func.func @transform_0(%arg0: i32, %arg1: i32) -> (i32, i32) {
    %c0_i32 = arith.constant 0 : i32
    %c0_i32_0 = arith.constant 0 : i32
    return %arg0, %c0_i32 : i32, i32
  }
  func.func @transform_1(%arg0: i32, %arg1: i32) -> (i32, i32) {
    %c0_i32 = arith.constant 0 : i32
    %c0_i32_0 = arith.constant 0 : i32
    return %c0_i32, %arg1 : i32, i32
  }
  func.func @transform_2(%arg0: i32, %arg1: i32) -> (i32, i32) {
    %c1_i32 = arith.constant 1 : i32
    %0 = arith.addi %arg1, %c1_i32 : i32
    %c0_i32 = arith.constant 0 : i32
    %c0_i32_0 = arith.constant 0 : i32
    return %c0_i32, %0 : i32, i32
  }
  func.func @transform_3(%arg0: i32, %arg1: i32) -> (i32, i32) {
    %c0_i32 = arith.constant 0 : i32
    %c0_i32_0 = arith.constant 0 : i32
    return %arg1, %c0_i32 : i32, i32
  }
  func.func @transform_4(%arg0: i32, %arg1: i32) -> (i32, i32) {
    %c0_i32 = arith.constant 0 : i32
    %c0_i32_0 = arith.constant 0 : i32
    return %arg0, %c0_i32 : i32, i32
  }
}

</mosaic_0001>

<llo_original>
// kernel: tpu_custom_call.1
$region0: #{tpu_custom_call.1}
  #allocation0 [shape = 'u32[]', space=smem, size = 0x4, offset = 0x4, fixed_abs, tag = 'smem constant byte address 0x4 - core index']
  #allocation1 [shape = 'u32[144,128]{1,0:T(1,128)}', space=vmem, size = 0x12000, scoped, tag = 'internal scratch']
  %s0 = inlined_call_operand.hbm [shape: bf16[16,128], index: 0, kind: input, shape index: {}]
  %s1 = inlined_call_operand.hbm [shape: bf16[128,512], index: 1, kind: input, shape index: {}]
  %s2 = inlined_call_operand.hbm [shape: bf16[128,512], index: 2, kind: input, shape index: {}]
  %s3 = inlined_call_operand.hbm [shape: bf16[256,128], index: 3, kind: input, shape index: {}]
  %s4 = inlined_call_operand.hbm [shape: f32[16,128], index: 4, kind: output, shape index: {}]
  %s5 = sld [smem:[#allocation0]]
  $region46: #{tpu_custom_call.1} parent=0
    _
  %s7 = ssub.s32 1, %s5
  %s8 = scalar_select 0, %s7, %s5
  $region1: #{tpu_custom_call.1} parent=0
    #allocation2 [shape = 'u8[4096]{0}', space=vmem, size = 0x1000, scoped, tag = 'input window, operand 0, single buffered']
    #allocation3 [shape = 's32[1]{0}', space=sflag, size = 0x4, scoped, tag = 'scoped memory for tpu_custom_call.1']
    #allocation4 [shape = 's32[1]{0}', space=sflag, size = 0x4, scoped, tag = 'scoped memory for tpu_custom_call.1']
    #allocation5 [shape = 'u8[65536]{0}', space=vmem, size = 0x10000, scoped, tag = 'input window, operand 1, single buffered']
    #allocation6 [shape = 's32[1]{0}', space=sflag, size = 0x4, scoped, tag = 'scoped memory for tpu_custom_call.1']
    #allocation7 [shape = 'u8[65536]{0}', space=vmem, size = 0x10000, scoped, tag = 'input window, operand 2, single buffered']
    #allocation8 [shape = 'u8[65536]{0}', space=vmem, size = 0x10000, scoped, tag = 'input window, operand 3, single buffered']
    #allocation9 [shape = 's32[1]{0}', space=sflag, size = 0x4, scoped, tag = 'scoped memory for tpu_custom_call.1']
    #allocation10 [shape = 'u8[8192]{0}', space=vmem, size = 0x2000, scoped, tag = 'output window, operand 0, single buffered']
    %9 = vsyncpa [#allocation3], 0
    %10 = vsyncpa [#allocation6], 0
    %11 = vsyncpa [#allocation9], 0
    %12 = vsyncpa [#allocation4], 0
    // Predicated region
    $region2: #{tpu_custom_call.1} parent=1 // pred_check
      _
    $region3: #{tpu_custom_call.1} parent=1 // pred_check_branch
      %14 = sbr.rel (0) target = $region5
    $region4: #{tpu_custom_call.1} parent=1 // pred_region
      %s16 = ssub.s32 128, 128
      %17 = vsyncadd [#allocation3], %s16
      %s18 = sshll.u32 [#allocation2], 4
      %s19 = int_to_ptr.vmem [resolvable:$true] %s18
      %24 = dma.hbm_to_vmem [thread:$0]  %s0, 128, %s19, [#allocation3], 64, 64, 4
    $region5: #{tpu_custom_call.1} parent=1 // pred_fallthru
      _
    // Predicated region
    $region6: #{tpu_custom_call.1} parent=1 // pred_check
      _
    $region7: #{tpu_custom_call.1} parent=1 // pred_check_branch
      %26 = sbr.rel (0) target = $region9
    $region8: #{tpu_custom_call.1} parent=1 // pred_region
      %s28 = ssub.s32 2048, 2048
      %29 = vsyncadd [#allocation6], %s28
      %s30 = sshll.u32 [#allocation5], 4
      %s31 = int_to_ptr.vmem [resolvable:$true] %s30
      %36 = dma.hbm_to_vmem [thread:$0]  %s1, 2048, %s31, [#allocation6], 256, 128, 8
    $region9: #{tpu_custom_call.1} parent=1 // pred_fallthru
      _
    // Predicated region
    $region10: #{tpu_custom_call.1} parent=1 // pred_check
      _
    $region11: #{tpu_custom_call.1} parent=1 // pred_check_branch
      %38 = sbr.rel (0) target = $region13
    $region12: #{tpu_custom_call.1} parent=1 // pred_region
      %s39 = sadd.s32 0, 1
      %s40 = smul.u32 2, %s39
      %s42 = ssub.s32 2048, 2048
      %43 = vsyncadd [#allocation6], %s42
      %s44 = smul.addr %s40, 64
      %s45 = scalar_lea.hbm %s2, %s44
      %s46 = sshll.u32 [#allocation7], 4
      %s47 = int_to_ptr.vmem [resolvable:$true] %s46
      %52 = dma.hbm_to_vmem [thread:$0]  %s45, 2048, %s47, [#allocation6], 256, 128, 8
    $region13: #{tpu_custom_call.1} parent=1 // pred_fallthru
      _
    // Predicated region
    $region14: #{tpu_custom_call.1} parent=1 // pred_check
      _
    $region15: #{tpu_custom_call.1} parent=1 // pred_check_branch
      %54 = sbr.rel (0) target = $region17
    $region16: #{tpu_custom_call.1} parent=1 // pred_region
      %s56 = ssub.s32 2048, 2048
      %57 = vsyncadd [#allocation9], %s56
      %s58 = sshll.u32 [#allocation8], 4
      %s59 = int_to_ptr.vmem [resolvable:$true] %s58
      %64 = dma.hbm_to_vmem [thread:$0]  %s3, 2048, %s59, [#allocation9], 64, 64, 4
    $region17: #{tpu_custom_call.1} parent=1 // pred_fallthru
      _
    // Predicated region
    $region18: #{tpu_custom_call.1} parent=1 // pred_check
      _
    $region19: #{tpu_custom_call.1} parent=1 // pred_check_branch
      %66 = sbr.rel (0) target = $region21
    $region20: #{tpu_custom_call.1} parent=1 // pred_region
      %67 = dma.done [#allocation3], 128
    $region21: #{tpu_custom_call.1} parent=1 // pred_fallthru
      _
    // Predicated region
    $region22: #{tpu_custom_call.1} parent=1 // pred_check
      _
    $region23: #{tpu_custom_call.1} parent=1 // pred_check_branch
      %69 = sbr.rel (0) target = $region25
    $region24: #{tpu_custom_call.1} parent=1 // pred_region
      %70 = dma.done [#allocation6], 2048
    $region25: #{tpu_custom_call.1} parent=1 // pred_fallthru
      _
    // Predicated region
    $region26: #{tpu_custom_call.1} parent=1 // pred_check
      _
    $region27: #{tpu_custom_call.1} parent=1 // pred_check_branch
      %72 = sbr.rel (0) target = $region29
    $region28: #{tpu_custom_call.1} parent=1 // pred_region
      %73 = dma.done [#allocation6], 2048
    $region29: #{tpu_custom_call.1} parent=1 // pred_fallthru
      _
    // Predicated region
    $region30: #{tpu_custom_call.1} parent=1 // pred_check
      _
    $region31: #{tpu_custom_call.1} parent=1 // pred_check_branch
      %75 = sbr.rel (0) target = $region33
    $region32: #{tpu_custom_call.1} parent=1 // pred_region
      %76 = dma.done [#allocation9], 2048
    $region33: #{tpu_custom_call.1} parent=1 // pred_fallthru
      _
    %s77 = sadd.s32 0, 1
    %s78 = smul.u32 2, %s77
    %p80 = scmp.eq.s32.totalorder 0, 0
    // Predicated region
    $region34: #{tpu_custom_call.1} parent=1 // pred_check
      %p81 = pneg %p80
    $region35: #{tpu_custom_call.1} parent=1 // pred_check_branch
      %83 = sbr.rel (%p81) target = $region37
    $region36: #{tpu_custom_call.1} parent=1 // pred_region
      %84 = vst [vmem:[#allocation10] sm:$0xff] 0.0
      %85 = vst [vmem:[#allocation10 + $0x8] sm:$0xff] 0.0
    $region37: #{tpu_custom_call.1} parent=1 // pred_fallthru
      _
    %v86 = vld [vmem:[#allocation2] sm:$0xf]
    %v87 = vld [vmem:[#allocation2 + $0x4] sm:$0xf]
    %v88 = vld [vmem:[#allocation5] sm:$0xff]
    %v89 = vld [vmem:[#allocation5 + $0x8] sm:$0xff]
    %v90 = vld [vmem:[#allocation5 + $0x10] sm:$0xff]
    %v91 = vld [vmem:[#allocation5 + $0x18] sm:$0xff]
    %v92 = vld [vmem:[#allocation5 + $0x20] sm:$0xff]
    %v93 = vld [vmem:[#allocation5 + $0x28] sm:$0xff]
    %v94 = vld [vmem:[#allocation5 + $0x30] sm:$0xff]
    %v95 = vld [vmem:[#allocation5 + $0x38] sm:$0xff]
    %v96 = vld [vmem:[#allocation5 + $0x40] sm:$0xff]
    %v97 = vld [vmem:[#allocation5 + $0x48] sm:$0xff]
    %v98 = vld [vmem:[#allocation5 + $0x50] sm:$0xff]
    %v99 = vld [vmem:[#allocation5 + $0x58] sm:$0xff]
    %v100 = vld [vmem:[#allocation5 + $0x60] sm:$0xff]
    %v101 = vld [vmem:[#allocation5 + $0x68] sm:$0xff]
    %v102 = vld [vmem:[#allocation5 + $0x70] sm:$0xff]
    %v103 = vld [vmem:[#allocation5 + $0x78] sm:$0xff]
    %v106 = vunpack.c.l.b16 %v86
    %v107 = vunpack.c.l.b16 %v87
    %v108 = vpack.c.b16 %v107, %v106
    %v126 = vunpack.c.l.b16 %v88
    %v127 = vunpack.c.h.b16 %v88
    %v128 = vunpack.c.l.b16 %v89
    %v129 = vunpack.c.h.b16 %v89
    %v130 = vunpack.c.l.b16 %v90
    %v131 = vunpack.c.h.b16 %v90
    %v132 = vunpack.c.l.b16 %v91
    %v133 = vunpack.c.h.b16 %v91
    %v134 = vunpack.c.l.b16 %v92
    %v135 = vunpack.c.h.b16 %v92
    %v136 = vunpack.c.l.b16 %v93
    %v137 = vunpack.c.h.b16 %v93
    %v138 = vunpack.c.l.b16 %v94
    %v139 = vunpack.c.h.b16 %v94
    %v140 = vunpack.c.l.b16 %v95
    %v141 = vunpack.c.h.b16 %v95
    %v142 = vunpack.c.l.b16 %v96
    %v143 = vunpack.c.h.b16 %v96
    %v144 = vunpack.c.l.b16 %v97
    %v145 = vunpack.c.h.b16 %v97
    %v146 = vunpack.c.l.b16 %v98
    %v147 = vunpack.c.h.b16 %v98
    %v148 = vunpack.c.l.b16 %v99
    %v149 = vunpack.c.h.b16 %v99
    %v150 = vunpack.c.l.b16 %v100
    %v151 = vunpack.c.h.b16 %v100
    %v152 = vunpack.c.l.b16 %v101
    %v153 = vunpack.c.h.b16 %v101
    %v154 = vunpack.c.l.b16 %v102
    %v155 = vunpack.c.h.b16 %v102
    %v156 = vunpack.c.l.b16 %v103
    %v157 = vunpack.c.h.b16 %v103
    %v158 = vpack.c.b16 %v128, %v126
    %v159 = vpack.c.b16 %v129, %v127
    %v160 = vpack.c.b16 %v132, %v130
    %v161 = vpack.c.b16 %v133, %v131
    %v162 = vpack.c.b16 %v136, %v134
    %v163 = vpack.c.b16 %v137, %v135
    %v164 = vpack.c.b16 %v140, %v138
    %v165 = vpack.c.b16 %v141, %v139
    %v166 = vpack.c.b16 %v144, %v142
    %v167 = vpack.c.b16 %v145, %v143
    %v168 = vpack.c.b16 %v148, %v146
    %v169 = vpack.c.b16 %v149, %v147
    %v170 = vpack.c.b16 %v152, %v150
    %v171 = vpack.c.b16 %v153, %v151
    %v172 = vpack.c.b16 %v156, %v154
    %v173 = vpack.c.b16 %v157, %v155
    %190 = vmatprep.subr.bf16.mxu0 %v173
    %191 = vmatpush1.bf16.msra.mxu0 %v172
    %192 = vmatprep.subr.bf16.mxu0 %v171
    %193 = vmatpush1.bf16.msra.mxu0 %v170
    %194 = vmatprep.subr.bf16.mxu0 %v169
    %195 = vmatpush1.bf16.msra.mxu0 %v168
    %196 = vmatprep.subr.bf16.mxu0 %v167
    %197 = vmatpush1.bf16.msra.mxu0 %v166
    %198 = vmatprep.subr.bf16.mxu0 %v165
    %199 = vmatpush1.bf16.msra.mxu0 %v164
    %200 = vmatprep.subr.bf16.mxu0 %v163
    %201 = vmatpush1.bf16.msra.mxu0 %v162
    %202 = vmatprep.subr.bf16.mxu0 %v161
    %203 = vmatpush1.bf16.msra.mxu0 %v160
    %204 = vmatprep.subr.bf16.mxu0 %v159
    %205 = vmatpush1.bf16.msra.mxu0 %v158
    %206 = vmatprep.subr.bf16.mxu0 0
    %207 = vmatpush2.bf16.msra.mxu0 0
    %208 = vmatprep.subr.bf16.mxu0 0
    %209 = vmatpush2.bf16.msra.mxu0 0
    %210 = vmatprep.subr.bf16.mxu0 0
    %211 = vmatpush2.bf16.msra.mxu0 0
    %212 = vmatprep.subr.bf16.mxu0 0
    %213 = vmatpush2.bf16.msra.mxu0 0
    %214 = vmatprep.subr.bf16.mxu0 0
    %215 = vmatpush2.bf16.msra.mxu0 0
    %216 = vmatprep.subr.bf16.mxu0 0
    %217 = vmatpush2.bf16.msra.mxu0 0
    %218 = vmatprep.subr.bf16.mxu0 0
    %219 = vmatpush2.bf16.msra.mxu0 0
    %220 = vmatprep.subr.bf16.mxu0 0
    %221 = vmatpush2.bf16.msra.mxu0 0
    %222 = vmatprep.mubr.bf16.mxu0 0
    %223 = vmatmul.mubr.bf16.gmra.mxu0 %v108
    %v224 = vpop.f32.mrf.mxu0
    %v225 = vadd.f32 0.0, %v224
    %v226 = vpop.f32.mrf.mxu0
    %v227 = vadd.f32 0.0, %v226
    %v228 = vpop.f32.mrf.mxu0
    %v229 = vadd.f32 0.0, %v228
    %v230 = vpop.f32.mrf.mxu0
    %v231 = vadd.f32 0.0, %v230
    %232 = vdwg.mxu0
    %v233 = vld [vmem:[#allocation7] sm:$0xff]
    %v234 = vld [vmem:[#allocation7 + $0x8] sm:$0xff]
    %v235 = vld [vmem:[#allocation7 + $0x10] sm:$0xff]
    %v236 = vld [vmem:[#allocation7 + $0x18] sm:$0xff]
    %v237 = vld [vmem:[#allocation7 + $0x20] sm:$0xff]
    %v238 = vld [vmem:[#allocation7 + $0x28] sm:$0xff]
    %v239 = vld [vmem:[#allocation7 + $0x30] sm:$0xff]
    %v240 = vld [vmem:[#allocation7 + $0x38] sm:$0xff]
    %v241 = vld [vmem:[#allocation7 + $0x40] sm:$0xff]
    %v242 = vld [vmem:[#allocation7 + $0x48] sm:$0xff]
    %v243 = vld [vmem:[#allocation7 + $0x50] sm:$0xff]
    %v244 = vld [vmem:[#allocation7 + $0x58] sm:$0xff]
    %v245 = vld [vmem:[#allocation7 + $0x60] sm:$0xff]
    %v246 = vld [vmem:[#allocation7 + $0x68] sm:$0xff]
    %v247 = vld [vmem:[#allocation7 + $0x70] sm:$0xff]
    %v248 = vld [vmem:[#allocation7 + $0x78] sm:$0xff]
    %v265 = vunpack.c.l.b16 %v233
    %v266 = vunpack.c.h.b16 %v233
    %v267 = vunpack.c.l.b16 %v234
    %v268 = vunpack.c.h.b16 %v234
    %v269 = vunpack.c.l.b16 %v235
    %v270 = vunpack.c.h.b16 %v235
    %v271 = vunpack.c.l.b16 %v236
    %v272 = vunpack.c.h.b16 %v236
    %v273 = vunpack.c.l.b16 %v237
    %v274 = vunpack.c.h.b16 %v237
    %v275 = vunpack.c.l.b16 %v238
    %v276 = vunpack.c.h.b16 %v238
    %v277 = vunpack.c.l.b16 %v239
    %v278 = vunpack.c.h.b16 %v239
    %v279 = vunpack.c.l.b16 %v240
    %v280 = vunpack.c.h.b16 %v240
    %v281 = vunpack.c.l.b16 %v241
    %v282 = vunpack.c.h.b16 %v241
    %v283 = vunpack.c.l.b16 %v242
    %v284 = vunpack.c.h.b16 %v242
    %v285 = vunpack.c.l.b16 %v243
    %v286 = vunpack.c.h.b16 %v243
    %v287 = vunpack.c.l.b16 %v244
    %v288 = vunpack.c.h.b16 %v244
    %v289 = vunpack.c.l.b16 %v245
    %v290 = vunpack.c.h.b16 %v245
    %v291 = vunpack.c.l.b16 %v246
    %v292 = vunpack.c.h.b16 %v246
    %v293 = vunpack.c.l.b16 %v247
    %v294 = vunpack.c.h.b16 %v247
    %v295 = vunpack.c.l.b16 %v248
    %v296 = vunpack.c.h.b16 %v248
    %v297 = vpack.c.b16 %v267, %v265
    %v298 = vpack.c.b16 %v268, %v266
    %v299 = vpack.c.b16 %v271, %v269
    %v300 = vpack.c.b16 %v272, %v270
    %v301 = vpack.c.b16 %v275, %v273
    %v302 = vpack.c.b16 %v276, %v274
    %v303 = vpack.c.b16 %v279, %v277
    %v304 = vpack.c.b16 %v280, %v278
    %v305 = vpack.c.b16 %v283, %v281
    %v306 = vpack.c.b16 %v284, %v282
    %v307 = vpack.c.b16 %v287, %v285
    %v308 = vpack.c.b16 %v288, %v286
    %v309 = vpack.c.b16 %v291, %v289
    %v310 = vpack.c.b16 %v292, %v290
    %v311 = vpack.c.b16 %v295, %v293
    %v312 = vpack.c.b16 %v296, %v294
    %329 = vmatprep.subr.bf16.mxu0 %v312
    %330 = vmatpush1.bf16.msra.mxu0 %v311
    %331 = vmatprep.subr.bf16.mxu0 %v310
    %332 = vmatpush1.bf16.msra.mxu0 %v309
    %333 = vmatprep.subr.bf16.mxu0 %v308
    %334 = vmatpush1.bf16.msra.mxu0 %v307
    %335 = vmatprep.subr.bf16.mxu0 %v306
    %336 = vmatpush1.bf16.msra.mxu0 %v305
    %337 = vmatprep.subr.bf16.mxu0 %v304
    %338 = vmatpush1.bf16.msra.mxu0 %v303
    %339 = vmatprep.subr.bf16.mxu0 %v302
    %340 = vmatpush1.bf16.msra.mxu0 %v301
    %341 = vmatprep.subr.bf16.mxu0 %v300
    %342 = vmatpush1.bf16.msra.mxu0 %v299
    %343 = vmatprep.subr.bf16.mxu0 %v298
    %344 = vmatpush1.bf16.msra.mxu0 %v297
    %345 = vmatprep.subr.bf16.mxu0 0
    %346 = vmatpush2.bf16.msra.mxu0 0
    %347 = vmatprep.subr.bf16.mxu0 0
    %348 = vmatpush2.bf16.msra.mxu0 0
    %349 = vmatprep.subr.bf16.mxu0 0
    %350 = vmatpush2.bf16.msra.mxu0 0
    %351 = vmatprep.subr.bf16.mxu0 0
    %352 = vmatpush2.bf16.msra.mxu0 0
    %353 = vmatprep.subr.bf16.mxu0 0
    %354 = vmatpush2.bf16.msra.mxu0 0
    %355 = vmatprep.subr.bf16.mxu0 0
    %356 = vmatpush2.bf16.msra.mxu0 0
    %357 = vmatprep.subr.bf16.mxu0 0
    %358 = vmatpush2.bf16.msra.mxu0 0
    %359 = vmatprep.subr.bf16.mxu0 0
    %360 = vmatpush2.bf16.msra.mxu0 0
    %361 = vmatprep.mubr.bf16.mxu0 0
    %362 = vmatmul.mubr.bf16.gmra.mxu0 %v108
    %v363 = vpop.f32.mrf.mxu0
    %v364 = vadd.f32 0.0, %v363
    %v365 = vpop.f32.mrf.mxu0
    %v366 = vadd.f32 0.0, %v365
    %v367 = vpop.f32.mrf.mxu0
    %v368 = vadd.f32 0.0, %v367
    %v369 = vpop.f32.mrf.mxu0
    %v370 = vadd.f32 0.0, %v369
    %371 = vdwg.mxu0
    %v372 = vsub.f32 0.0, %v225
    %v373 = vsub.f32 0.0, %v227
    %v374 = vsub.f32 0.0, %v229
    %v375 = vsub.f32 0.0, %v231
    %v376 = vmul.f32 %v372, 1.442695
    %v377 = vpow.pop %v376
    %v378 = vmul.f32 %v373, 1.442695
    %v379 = vpow.pop %v378
    %v380 = vmul.f32 %v374, 1.442695
    %v381 = vpow.pop %v380
    %v382 = vmul.f32 %v375, 1.442695
    %v383 = vpow.pop %v382
    %v384 = vadd.f32 %v377, 1.0
    %v385 = vadd.f32 %v379, 1.0
    %v386 = vadd.f32 %v381, 1.0
    %v387 = vadd.f32 %v383, 1.0
    %v388 = vrcp.pop %v384
    %v389 = vrcp.pop %v385
    %v390 = vrcp.pop %v386
    %v391 = vrcp.pop %v387
    %v392 = vmul.f32 %v225, %v388
    %v393 = vmul.f32 %v227, %v389
    %v394 = vmul.f32 %v229, %v390
    %v395 = vmul.f32 %v231, %v391
    %v396 = vmul.f32 %v392, %v364
    %v397 = vmul.f32 %v393, %v366
    %v398 = vmul.f32 %v394, %v368
    %v399 = vmul.f32 %v395, %v370
    %v400 = vld [vmem:[#allocation10] sm:$0xff]
    %v401 = vld [vmem:[#allocation10 + $0x8] sm:$0xff]
    %v402 = vpack.c.bf16 %v398, %v396
    %v403 = vpack.c.bf16 %v399, %v397
    %v404 = vld [vmem:[#allocation8] sm:$0xf]
    %v405 = vld [vmem:[#allocation8 + $0x4] sm:$0xf]
    %v406 = vld [vmem:[#allocation8 + $0x8] sm:$0xf]
    %v407 = vld [vmem:[#allocation8 + $0xc] sm:$0xf]
    %v408 = vld [vmem:[#allocation8 + $0x10] sm:$0xf]
    %v409 = vld [vmem:[#allocation8 + $0x14] sm:$0xf]
    %v410 = vld [vmem:[#allocation8 + $0x18] sm:$0xf]
    %v411 = vld [vmem:[#allocation8 + $0x1c] sm:$0xf]
    %v412 = vld [vmem:[#allocation8 + $0x20] sm:$0xf]
    %v413 = vld [vmem:[#allocation8 + $0x24] sm:$0xf]
    %v414 = vld [vmem:[#allocation8 + $0x28] sm:$0xf]
    %v415 = vld [vmem:[#allocation8 + $0x2c] sm:$0xf]
    %v416 = vld [vmem:[#allocation8 + $0x30] sm:$0xf]
    %v417 = vld [vmem:[#allocation8 + $0x34] sm:$0xf]
    %v418 = vld [vmem:[#allocation8 + $0x38] sm:$0xf]
    %v419 = vld [vmem:[#allocation8 + $0x3c] sm:$0xf]
    %v420 = vld [vmem:[#allocation8 + $0x40] sm:$0xf]
    %v421 = vld [vmem:[#allocation8 + $0x44] sm:$0xf]
    %v422 = vld [vmem:[#allocation8 + $0x48] sm:$0xf]
    %v423 = vld [vmem:[#allocation8 + $0x4c] sm:$0xf]
    %v424 = vld [vmem:[#allocation8 + $0x50] sm:$0xf]
    %v425 = vld [vmem:[#allocation8 + $0x54] sm:$0xf]
    %v426 = vld [vmem:[#allocation8 + $0x58] sm:$0xf]
    %v427 = vld [vmem:[#allocation8 + $0x5c] sm:$0xf]
    %v428 = vld [vmem:[#allocation8 + $0x60] sm:$0xf]
    %v429 = vld [vmem:[#allocation8 + $0x64] sm:$0xf]
    %v430 = vld [vmem:[#allocation8 + $0x68] sm:$0xf]
    %v431 = vld [vmem:[#allocation8 + $0x6c] sm:$0xf]
    %v432 = vld [vmem:[#allocation8 + $0x70] sm:$0xf]
    %v433 = vld [vmem:[#allocation8 + $0x74] sm:$0xf]
    %v434 = vld [vmem:[#allocation8 + $0x78] sm:$0xf]
    %v435 = vld [vmem:[#allocation8 + $0x7c] sm:$0xf]
    %v468 = vunpack.c.l.b16 %v404
    %v469 = vunpack.c.l.b16 %v405
    %v470 = vunpack.c.l.b16 %v406
    %v471 = vunpack.c.l.b16 %v407
    %v472 = vunpack.c.l.b16 %v408
    %v473 = vunpack.c.l.b16 %v409
    %v474 = vunpack.c.l.b16 %v410
    %v475 = vunpack.c.l.b16 %v411
    %v476 = vunpack.c.l.b16 %v412
    %v477 = vunpack.c.l.b16 %v413
    %v478 = vunpack.c.l.b16 %v414
    %v479 = vunpack.c.l.b16 %v415
    %v480 = vunpack.c.l.b16 %v416
    %v481 = vunpack.c.l.b16 %v417
    %v482 = vunpack.c.l.b16 %v418
    %v483 = vunpack.c.l.b16 %v419
    %v484 = vunpack.c.l.b16 %v420
    %v485 = vunpack.c.l.b16 %v421
    %v486 = vunpack.c.l.b16 %v422
    %v487 = vunpack.c.l.b16 %v423
    %v488 = vunpack.c.l.b16 %v424
    %v489 = vunpack.c.l.b16 %v425
    %v490 = vunpack.c.l.b16 %v426
    %v491 = vunpack.c.l.b16 %v427
    %v492 = vunpack.c.l.b16 %v428
    %v493 = vunpack.c.l.b16 %v429
    %v494 = vunpack.c.l.b16 %v430
    %v495 = vunpack.c.l.b16 %v431
    %v496 = vunpack.c.l.b16 %v432
    %v497 = vunpack.c.l.b16 %v433
    %v498 = vunpack.c.l.b16 %v434
    %v499 = vunpack.c.l.b16 %v435
    %v500 = vpack.c.b16 %v469, %v468
    %v501 = vpack.c.b16 %v471, %v470
    %v502 = vpack.c.b16 %v473, %v472
    %v503 = vpack.c.b16 %v475, %v474
    %v504 = vpack.c.b16 %v477, %v476
    %v505 = vpack.c.b16 %v479, %v478
    %v506 = vpack.c.b16 %v481, %v480
    %v507 = vpack.c.b16 %v483, %v482
    %v508 = vpack.c.b16 %v485, %v484
    %v509 = vpack.c.b16 %v487, %v486
    %v510 = vpack.c.b16 %v489, %v488
    %v511 = vpack.c.b16 %v491, %v490
    %v512 = vpack.c.b16 %v493, %v492
    %v513 = vpack.c.b16 %v495, %v494
    %v514 = vpack.c.b16 %v497, %v496
    %v515 = vpack.c.b16 %v499, %v498
    %532 = vmatprep.subr.bf16.mxu0 0
    %533 = vmatpush1.bf16.msra.mxu0 %v507
    %534 = vmatprep.subr.bf16.mxu0 0
    %535 = vmatpush1.bf16.msra.mxu0 %v506
    %536 = vmatprep.subr.bf16.mxu0 0
    %537 = vmatpush1.bf16.msra.mxu0 %v505
    %538 = vmatprep.subr.bf16.mxu0 0
    %539 = vmatpush1.bf16.msra.mxu0 %v504
    %540 = vmatprep.subr.bf16.mxu0 0
    %541 = vmatpush1.bf16.msra.mxu0 %v503
    %542 = vmatprep.subr.bf16.mxu0 0
    %543 = vmatpush1.bf16.msra.mxu0 %v502
    %544 = vmatprep.subr.bf16.mxu0 0
    %545 = vmatpush1.bf16.msra.mxu0 %v501
    %546 = vmatprep.subr.bf16.mxu0 0
    %547 = vmatpush1.bf16.msra.mxu0 %v500
    %548 = vmatprep.subr.bf16.mxu0 0
    %549 = vmatpush2.bf16.msra.mxu0 %v515
    %550 = vmatprep.subr.bf16.mxu0 0
    %551 = vmatpush2.bf16.msra.mxu0 %v514
    %552 = vmatprep.subr.bf16.mxu0 0
    %553 = vmatpush2.bf16.msra.mxu0 %v513
    %554 = vmatprep.subr.bf16.mxu0 0
    %555 = vmatpush2.bf16.msra.mxu0 %v512
    %556 = vmatprep.subr.bf16.mxu0 0
    %557 = vmatpush2.bf16.msra.mxu0 %v511
    %558 = vmatprep.subr.bf16.mxu0 0
    %559 = vmatpush2.bf16.msra.mxu0 %v510
    %560 = vmatprep.subr.bf16.mxu0 0
    %561 = vmatpush2.bf16.msra.mxu0 %v509
    %562 = vmatprep.subr.bf16.mxu0 0
    %563 = vmatpush2.bf16.msra.mxu0 %v508
    %564 = vmatprep.mubr.bf16.mxu0 %v403
    %565 = vmatmul.mubr.bf16.gmra.mxu0 %v402
    %v566 = vpop.f32.mrf.mxu0
    %v567 = vadd.f32 0.0, %v566
    %v568 = vpop.f32.mrf.mxu0
    %v569 = vpop.f32.mrf.mxu0
    %v570 = vadd.f32 0.0, %v569
    %v571 = vpop.f32.mrf.mxu0
    %572 = vdwg.mxu0
    %v573 = vadd.f32 %v400, %v567
    %v574 = vadd.f32 %v401, %v570
    %575 = vst [vmem:[#allocation10] sm:$0xff] %v573
    %576 = vst [vmem:[#allocation10 + $0x8] sm:$0xff] %v574
    // Predicated region
    $region38: #{tpu_custom_call.1} parent=1 // pred_check
      _
    $region39: #{tpu_custom_call.1} parent=1 // pred_check_branch
      %578 = sbr.rel (0) target = $region41
    $region40: #{tpu_custom_call.1} parent=1 // pred_region
      %s580 = ssub.s32 256, 256
      %581 = vsyncadd [#allocation4], %s580
      %s582 = sshll.u32 [#allocation10], 4
      %s583 = int_to_ptr.vmem [resolvable:$true] %s582
      %588 = dma.vmem_to_hbm [thread:$0]  %s583, 256, %s4, [#allocation4], 128, 128, 8
    $region41: #{tpu_custom_call.1} parent=1 // pred_fallthru
      _
    // Predicated region
    $region42: #{tpu_custom_call.1} parent=1 // pred_check
      _
    $region43: #{tpu_custom_call.1} parent=1 // pred_check_branch
      %590 = sbr.rel (0) target = $region45
    $region44: #{tpu_custom_call.1} parent=1 // pred_region
      %591 = dma.done [#allocation4], 256
    $region45: #{tpu_custom_call.1} parent=1 // pred_fallthru
      _
    %592 = vsyncpa [#allocation3], 1
    %593 = vsyncpa [#allocation6], 1
    %594 = vsyncpa [#allocation9], 1
    %595 = vsyncpa [#allocation4], 1

</llo_original>
